<compile_context>
chip_gen: v7x
topology: tpu7x:2x2x1
jax: 0.10.0
libtpu: 0.0.40
codegen_flags: <defaults>
</compile_context>

<pallas_src>
import jax
import jax.numpy as jnp
from jax import lax
from jax.experimental import pallas as pl
from jax.experimental.pallas import tpu as pltpu

# ---------------- model hyper-parameters (small, consistent with forward) ---
VOCAB = 50              # config.vocab_size
D = 128                 # config.words_dim
S = 16                  # sequence length
B = 2                   # batch
OC = 8                  # config.output_channel
C = 4                   # config.target_classes
KS = (3, 4, 5)          # conv kernel heights

NSHIFT = max(KS)        # 5 shift slots in the packed conv formulation
MAXPAD = NSHIFT - 1     # 4 == largest conv padding
LMAXP = 24              # padded conv-output rows per batch (mult of 8, >= S+MAXPAD=20)
M = B * LMAXP           # 48 rows folded into the matmul M dimension
NF = len(KS) * OC       # 24 concatenated conv features
VOCAB_PAD = 128         # vocab padded to one lane tile
CPAD = 128              # lane-dense logits slab width
BPAD = 8                # sublane-dense logits slab height


def cnn_kernel(tok_ref,                     # (NSHIFT, M, 1) int32 shifted ids
               pconv_ref,                   # (NSHIFT*VOCAB_PAD, NF)  emb-folded conv weight
               bconv_ref,                   # (1, NF)
               mask_ref,                    # (M, NF) static 0/1 validity mask
               wfc_ref, bfc_ref,            # (NF, CPAD), (1, CPAD)
               o_ref):                      # (BPAD, CPAD)
    lane_v = lax.broadcasted_iota(jnp.int32, (M, VOCAB_PAD), 1)

    # Per-shift accumulation: a one-hot row (all-zero for the -1 zero-pad
    # sentinel) selects the embedding-folded conv-weight row on the MXU.
    # No im2col intermediate is ever materialized.
    h = jnp.zeros((M, NF), jnp.float32)
    for s in range(NSHIFT):
        tok_s = tok_ref[s]                                    # (M, 1) int32
        onehot = (lane_v == tok_s).astype(jnp.float32)        # (M, VOCAB_PAD)
        p_s = pconv_ref[s * VOCAB_PAD:(s + 1) * VOCAB_PAD, :]  # (128, NF), static slice
        h = h + jnp.dot(onehot, p_s, preferred_element_type=jnp.float32)

    # Bias + ReLU, then zero rows beyond each conv's valid output length
    # (exact: every valid ReLU max is >= 0).  Mask is precomputed (static).
    h = jnp.maximum(h + bconv_ref[...], 0.0) * mask_ref[...]

    # Global max-pool per batch element, then fused concat + Linear.
    pooled = [jnp.max(h[b * LMAXP:(b + 1) * LMAXP, :], axis=0, keepdims=True)
              for b in range(B)]
    pooled.append(jnp.zeros((BPAD - B, NF), jnp.float32))     # pad to full tile
    feat = jnp.concatenate(pooled, axis=0)                    # (BPAD, NF)

    # TODO(synk): dropout is identity in eval mode; not implemented in-kernel.
    logits = jnp.dot(feat, wfc_ref[...], preferred_element_type=jnp.float32)
    o_ref[...] = (logits + bfc_ref[...]).astype(o_ref.dtype)  # lane-dense store


@jax.jit
def cnn_forward(tokens, embed, params):
    """tokens: (B, S) int token ids -> logits (B, C)."""
    w1, b1, w2, b2, w3, b3, wfc, bfc = params

    # ---- weight packing (parameters only; no activation compute hoisted) ----
    emb_pad = jnp.zeros((VOCAB_PAD, D), jnp.float32).at[:VOCAB].set(embed)
    wp = jnp.zeros((NSHIFT, D, NF), jnp.float32)
    for ci, (kh, w) in enumerate(zip(KS, (w1, w2, w3))):
        # shift slot s holds w_kh[s - (NSHIFT - kh)] for s >= NSHIFT - kh, else 0
        wp = wp.at[NSHIFT - kh:, :, ci * OC:(ci + 1) * OC].set(w)
    # Fold the embedding into the conv weight: P[s*128+v, f] = sum_d emb[v,d]*wp[s,d,f]
    pconv = jnp.einsum('vd,sdf->svf', emb_pad, wp).reshape(NSHIFT * VOCAB_PAD, NF)
    bconv = jnp.concatenate([b1, b2, b3], axis=1)             # (1, 3*OC)
    wfc_pad = jnp.zeros((NF, CPAD), jnp.float32).at[:, :C].set(wfc)
    bfc_pad = jnp.zeros((1, CPAD), jnp.float32).at[:, :C].set(bfc)

    # ---- static validity mask: row r of conv block kh is valid iff r < S+kh-1
    r = jnp.arange(LMAXP)[:, None]                            # (LMAXP, 1)
    lim = jnp.repeat(jnp.array([S + kh - 1 for kh in KS], jnp.int32), OC)[None, :]
    mask = jnp.tile((r < lim).astype(jnp.float32), (B, 1))    # (M, NF)

    # ---- shifted token-id table (pure index plumbing on ~100 ints) ----
    # tok_sh[s, b*LMAXP + r, 0] = tokens[b, r + s - MAXPAD], or -1 (zero-pad
    # marker) when r + s - MAXPAD lies outside [0, S).
    tpad = jnp.full((B, LMAXP + MAXPAD), -1, jnp.int32)
    tpad = tpad.at[:, MAXPAD:MAXPAD + S].set(tokens.astype(jnp.int32))
    tok_sh = jnp.stack([tpad[:, s:s + LMAXP] for s in range(NSHIFT)], axis=0)
    tok_sh = tok_sh.reshape(NSHIFT, M, 1)

    full = lambda a: pl.BlockSpec(a.shape, lambda i: (0,) * a.ndim)
    out = pl.pallas_call(
        cnn_kernel,
        out_shape=jax.ShapeDtypeStruct((BPAD, CPAD), jnp.float32),
        grid_spec=pltpu.PrefetchScalarGridSpec(
            num_scalar_prefetch=0,
            grid=(1,),                                        # whole batch, one step
            in_specs=[full(tok_sh), full(pconv), full(bconv), full(mask),
                      full(wfc_pad), full(bfc_pad)],
            out_specs=pl.BlockSpec((BPAD, CPAD), lambda i: (0, 0)),
        ),
        compiler_params=pltpu.CompilerParams(
            dimension_semantics=("arbitrary",)),
    )(tok_sh, pconv, bconv, mask, wfc_pad, bfc_pad)
    return out[:B, :C]


def ref_forward(x_emb, params):
    """Pure-JAX reference matching the PyTorch forward (eval mode)."""
    w1, b1, w2, b2, w3, b3, wfc, bfc = params
    x = x_emb[:, None, :, :]                                  # (B, 1, S, D) NCHW
    feats = []
    for kh, w, bias in ((3, w1, b1), (4, w2, b2), (5, w3, b3)):
        w_oihw = jnp.transpose(w, (2, 0, 1))[:, None, :, :]   # (OC, 1, kh, D)
        y = lax.conv_general_dilated(
            x, w_oihw, window_strides=(1, 1),
            padding=[(kh - 1, kh - 1), (0, 0)],
            dimension_numbers=("NCHW", "OIHW", "NCHW"))
        y = y + bias[0][None, :, None, None]
        y = jax.nn.relu(y)[:, :, :, 0]                        # (B, OC, L)
        feats.append(jnp.max(y, axis=2))                      # (B, OC)
    feat = jnp.concatenate(feats, axis=1)                     # (B, 3*OC)
    return feat @ wfc + bfc[0]


def init_params(key):
    ks = jax.random.split(key, 9)
    embed = jax.random.uniform(ks[0], (VOCAB, D), jnp.float32, -0.25, 0.25)

    def conv_w(k, kh):
        # stored as (kh, D, OC) == transpose of PyTorch (OC, 1, kh, D)
        return jax.random.normal(k, (kh, D, OC), jnp.float32) * 0.1

    w1 = conv_w(ks[1], 3); b1 = jax.random.normal(ks[2], (1, OC)) * 0.1
    w2 = conv_w(ks[3], 4); b2 = jax.random.normal(ks[4], (1, OC)) * 0.1
    w3 = conv_w(ks[5], 5); b3 = jax.random.normal(ks[6], (1, OC)) * 0.1
    wfc = jax.random.normal(ks[7], (3 * OC, C), jnp.float32) * 0.1
    bfc = jax.random.normal(ks[8], (1, C), jnp.float32) * 0.1
    return embed, (w1, b1, w2, b2, w3, b3, wfc, bfc)


if __name__ == "__main__":
    key = jax.random.PRNGKey(0)
    embed, params = init_params(key)
    tokens = jax.random.randint(jax.random.PRNGKey(1), (B, S), 0, VOCAB)

    # Kernel consumes raw token ids (embedding lookup is folded into weights).
    logits = jax.block_until_ready(cnn_forward(tokens, embed, params))

    # Reference path uses the plain-JAX embedding gather + conv graph.
    x_emb = jnp.take(embed, tokens, axis=0)                   # (B, S, D)
    ref = jax.block_until_ready(ref_forward(x_emb, params))

    assert logits.shape == (B, C)
    assert jnp.allclose(logits, ref, atol=5e-4, rtol=5e-4), (logits, ref)
    print("KERNEL_OK")
</pallas_src>

<mosaic_0001>
module attributes {stable_mosaic.version = 11 : i64} {
  func.func @cnn_kernel(%arg0: i32, %arg1: memref<5x48x1xi32, #tpu.memory_space<vmem>>, %arg2: memref<640x24xf32, #tpu.memory_space<vmem>>, %arg3: memref<1x24xf32, #tpu.memory_space<vmem>>, %arg4: memref<48x24xf32, #tpu.memory_space<vmem>>, %arg5: memref<24x128xf32, #tpu.memory_space<vmem>>, %arg6: memref<1x128xf32, #tpu.memory_space<vmem>>, %arg7: memref<8x128xf32, #tpu.memory_space<vmem>>) attributes {dimension_semantics = [#tpu.dimension_semantics<arbitrary>], iteration_bounds = array<i64: 1>, scalar_prefetch = 0 : i64, scratch_operands = 0 : i64, tpu.core_type = #tpu.core_type<tc>, window_params = [{pipeline_mode = #tpu.pipeline_mode<synchronous>, transform_indices = @transform_0, window_bounds = array<i64: 5, 48, 1>}, {pipeline_mode = #tpu.pipeline_mode<synchronous>, transform_indices = @transform_1, window_bounds = array<i64: 640, 24>}, {pipeline_mode = #tpu.pipeline_mode<synchronous>, transform_indices = @transform_2, window_bounds = array<i64: 1, 24>}, {pipeline_mode = #tpu.pipeline_mode<synchronous>, transform_indices = @transform_3, window_bounds = array<i64: 48, 24>}, {pipeline_mode = #tpu.pipeline_mode<synchronous>, transform_indices = @transform_4, window_bounds = array<i64: 24, 128>}, {pipeline_mode = #tpu.pipeline_mode<synchronous>, transform_indices = @transform_5, window_bounds = array<i64: 1, 128>}, {pipeline_mode = #tpu.pipeline_mode<synchronous>, transform_indices = @transform_6, window_bounds = array<i64: 8, 128>}]} {
    %0 = tpu.iota {dimensions = array<i32: 1>} : vector<48x128xi32>
    %cst = arith.constant 0.000000e+00 : f32
    %1 = vector.broadcast %cst : f32 to vector<48x24xf32>
    %c0 = arith.constant 0 : index
    %c0_0 = arith.constant 0 : index
    %c0_1 = arith.constant 0 : index
    %2 = vector.load %arg1[%c0, %c0_0, %c0_1] : memref<5x48x1xi32, #tpu.memory_space<vmem>>, vector<1x48x1xi32>
    %3 = vector.shape_cast %2 : vector<1x48x1xi32> to vector<48x1xi32>
    %4 = vector.broadcast %3 : vector<48x1xi32> to vector<48x128xi32>
    %5 = arith.cmpi eq, %0, %4 : vector<48x128xi32>
    %6 = arith.extui %5 : vector<48x128xi1> to vector<48x128xi32>
    %7 = arith.sitofp %6 : vector<48x128xi32> to vector<48x128xf32>
    %c0_2 = arith.constant 0 : index
    %c0_3 = arith.constant 0 : index
    %8 = vector.load %arg2[%c0_2, %c0_3] : memref<640x24xf32, #tpu.memory_space<vmem>>, vector<128x24xf32>
    %cst_4 = arith.constant dense<0.000000e+00> : vector<48x24xf32>
    %9 = tpu.matmul %7, %8, %cst_4 {dimension_numbers = #tpu.dot_dimension_numbers<[1], [0], [0], [1], [0, 0, 1, 1], [], []>} : vector<48x128xf32>, vector<128x24xf32>, vector<48x24xf32> -> vector<48x24xf32>
    %10 = arith.addf %1, %9 : vector<48x24xf32>
    %c1 = arith.constant 1 : index
    %c0_5 = arith.constant 0 : index
    %c0_6 = arith.constant 0 : index
    %11 = vector.load %arg1[%c1, %c0_5, %c0_6] : memref<5x48x1xi32, #tpu.memory_space<vmem>>, vector<1x48x1xi32>
    %12 = vector.shape_cast %11 : vector<1x48x1xi32> to vector<48x1xi32>
    %13 = vector.broadcast %12 : vector<48x1xi32> to vector<48x128xi32>
    %14 = arith.cmpi eq, %0, %13 : vector<48x128xi32>
    %15 = arith.extui %14 : vector<48x128xi1> to vector<48x128xi32>
    %16 = arith.sitofp %15 : vector<48x128xi32> to vector<48x128xf32>
    %c128 = arith.constant 128 : index
    %c0_7 = arith.constant 0 : index
    %17 = vector.load %arg2[%c128, %c0_7] : memref<640x24xf32, #tpu.memory_space<vmem>>, vector<128x24xf32>
    %cst_8 = arith.constant dense<0.000000e+00> : vector<48x24xf32>
    %18 = tpu.matmul %16, %17, %cst_8 {dimension_numbers = #tpu.dot_dimension_numbers<[1], [0], [0], [1], [0, 0, 1, 1], [], []>} : vector<48x128xf32>, vector<128x24xf32>, vector<48x24xf32> -> vector<48x24xf32>
    %19 = arith.addf %10, %18 : vector<48x24xf32>
    %c2 = arith.constant 2 : index
    %c0_9 = arith.constant 0 : index
    %c0_10 = arith.constant 0 : index
    %20 = vector.load %arg1[%c2, %c0_9, %c0_10] : memref<5x48x1xi32, #tpu.memory_space<vmem>>, vector<1x48x1xi32>
    %21 = vector.shape_cast %20 : vector<1x48x1xi32> to vector<48x1xi32>
    %22 = vector.broadcast %21 : vector<48x1xi32> to vector<48x128xi32>
    %23 = arith.cmpi eq, %0, %22 : vector<48x128xi32>
    %24 = arith.extui %23 : vector<48x128xi1> to vector<48x128xi32>
    %25 = arith.sitofp %24 : vector<48x128xi32> to vector<48x128xf32>
    %c256 = arith.constant 256 : index
    %c0_11 = arith.constant 0 : index
    %26 = vector.load %arg2[%c256, %c0_11] : memref<640x24xf32, #tpu.memory_space<vmem>>, vector<128x24xf32>
    %cst_12 = arith.constant dense<0.000000e+00> : vector<48x24xf32>
    %27 = tpu.matmul %25, %26, %cst_12 {dimension_numbers = #tpu.dot_dimension_numbers<[1], [0], [0], [1], [0, 0, 1, 1], [], []>} : vector<48x128xf32>, vector<128x24xf32>, vector<48x24xf32> -> vector<48x24xf32>
    %28 = arith.addf %19, %27 : vector<48x24xf32>
    %c3 = arith.constant 3 : index
    %c0_13 = arith.constant 0 : index
    %c0_14 = arith.constant 0 : index
    %29 = vector.load %arg1[%c3, %c0_13, %c0_14] : memref<5x48x1xi32, #tpu.memory_space<vmem>>, vector<1x48x1xi32>
    %30 = vector.shape_cast %29 : vector<1x48x1xi32> to vector<48x1xi32>
    %31 = vector.broadcast %30 : vector<48x1xi32> to vector<48x128xi32>
    %32 = arith.cmpi eq, %0, %31 : vector<48x128xi32>
    %33 = arith.extui %32 : vector<48x128xi1> to vector<48x128xi32>
    %34 = arith.sitofp %33 : vector<48x128xi32> to vector<48x128xf32>
    %c384 = arith.constant 384 : index
    %c0_15 = arith.constant 0 : index
    %35 = vector.load %arg2[%c384, %c0_15] : memref<640x24xf32, #tpu.memory_space<vmem>>, vector<128x24xf32>
    %cst_16 = arith.constant dense<0.000000e+00> : vector<48x24xf32>
    %36 = tpu.matmul %34, %35, %cst_16 {dimension_numbers = #tpu.dot_dimension_numbers<[1], [0], [0], [1], [0, 0, 1, 1], [], []>} : vector<48x128xf32>, vector<128x24xf32>, vector<48x24xf32> -> vector<48x24xf32>
    %37 = arith.addf %28, %36 : vector<48x24xf32>
    %c4 = arith.constant 4 : index
    %c0_17 = arith.constant 0 : index
    %c0_18 = arith.constant 0 : index
    %38 = vector.load %arg1[%c4, %c0_17, %c0_18] : memref<5x48x1xi32, #tpu.memory_space<vmem>>, vector<1x48x1xi32>
    %39 = vector.shape_cast %38 : vector<1x48x1xi32> to vector<48x1xi32>
    %40 = vector.broadcast %39 : vector<48x1xi32> to vector<48x128xi32>
    %41 = arith.cmpi eq, %0, %40 : vector<48x128xi32>
    %42 = arith.extui %41 : vector<48x128xi1> to vector<48x128xi32>
    %43 = arith.sitofp %42 : vector<48x128xi32> to vector<48x128xf32>
    %c512 = arith.constant 512 : index
    %c0_19 = arith.constant 0 : index
    %44 = vector.load %arg2[%c512, %c0_19] : memref<640x24xf32, #tpu.memory_space<vmem>>, vector<128x24xf32>
    %cst_20 = arith.constant dense<0.000000e+00> : vector<48x24xf32>
    %45 = tpu.matmul %43, %44, %cst_20 {dimension_numbers = #tpu.dot_dimension_numbers<[1], [0], [0], [1], [0, 0, 1, 1], [], []>} : vector<48x128xf32>, vector<128x24xf32>, vector<48x24xf32> -> vector<48x24xf32>
    %46 = arith.addf %37, %45 : vector<48x24xf32>
    %c0_21 = arith.constant 0 : index
    %c0_22 = arith.constant 0 : index
    %47 = vector.load %arg3[%c0_21, %c0_22] : memref<1x24xf32, #tpu.memory_space<vmem>>, vector<1x24xf32>
    %48 = vector.broadcast %47 : vector<1x24xf32> to vector<48x24xf32>
    %49 = arith.addf %46, %48 : vector<48x24xf32>
    %cst_23 = arith.constant 0.000000e+00 : f32
    %50 = vector.broadcast %cst_23 : f32 to vector<48x24xf32>
    %51 = arith.maximumf %49, %50 : vector<48x24xf32>
    %c0_24 = arith.constant 0 : index
    %c0_25 = arith.constant 0 : index
    %52 = vector.load %arg4[%c0_24, %c0_25] : memref<48x24xf32, #tpu.memory_space<vmem>>, vector<48x24xf32>
    %53 = arith.mulf %51, %52 : vector<48x24xf32>
    %54 = vector.extract_strided_slice %53 {offsets = [0, 0], sizes = [24, 24], strides = [1, 1]} : vector<48x24xf32> to vector<24x24xf32>
    %cst_26 = arith.constant dense<0xFF800000> : vector<24xf32>
    %55 = vector.multi_reduction <maximumf>, %54, %cst_26 [0] : vector<24x24xf32> to vector<24xf32>
    %56 = vector.shape_cast %55 : vector<24xf32> to vector<1x24xf32>
    %57 = vector.extract_strided_slice %53 {offsets = [24, 0], sizes = [24, 24], strides = [1, 1]} : vector<48x24xf32> to vector<24x24xf32>
    %cst_27 = arith.constant dense<0xFF800000> : vector<24xf32>
    %58 = vector.multi_reduction <maximumf>, %57, %cst_27 [0] : vector<24x24xf32> to vector<24xf32>
    %59 = vector.shape_cast %58 : vector<24xf32> to vector<1x24xf32>
    %cst_28 = arith.constant 0.000000e+00 : f32
    %60 = vector.broadcast %cst_28 : f32 to vector<6x24xf32>
    %61 = tpu.concatenate %56, %59, %60 in 0 : vector<1x24xf32>, vector<1x24xf32>, vector<6x24xf32> -> vector<8x24xf32>
    %c0_29 = arith.constant 0 : index
    %c0_30 = arith.constant 0 : index
    %62 = vector.load %arg5[%c0_29, %c0_30] : memref<24x128xf32, #tpu.memory_space<vmem>>, vector<24x128xf32>
    %cst_31 = arith.constant dense<0.000000e+00> : vector<8x128xf32>
    %63 = tpu.matmul %61, %62, %cst_31 {dimension_numbers = #tpu.dot_dimension_numbers<[1], [0], [0], [1], [0, 0, 1, 1], [], []>} : vector<8x24xf32>, vector<24x128xf32>, vector<8x128xf32> -> vector<8x128xf32>
    %c0_32 = arith.constant 0 : index
    %c0_33 = arith.constant 0 : index
    %64 = vector.load %arg6[%c0_32, %c0_33] : memref<1x128xf32, #tpu.memory_space<vmem>>, vector<1x128xf32>
    %65 = vector.broadcast %64 : vector<1x128xf32> to vector<8x128xf32>
    %66 = arith.addf %63, %65 : vector<8x128xf32>
    %c0_34 = arith.constant 0 : index
    %c0_35 = arith.constant 0 : index
    %67 = vector.load %arg7[%c0_34, %c0_35] : memref<8x128xf32, #tpu.memory_space<vmem>>, vector<8x128xf32>
    tpu.vector_store %arg7[%c0_34, %c0_35], %66 {strides = array<i32>} : memref<8x128xf32, #tpu.memory_space<vmem>>, vector<8x128xf32>,
    return
  }
  func.func @transform_0(%arg0: i32) -> (i32, i32, i32) {
    %c0_i32 = arith.constant 0 : i32
    %c0_i32_0 = arith.constant 0 : i32
    %c0_i32_1 = arith.constant 0 : i32
    %c0_i32_2 = arith.constant 0 : i32
    return %c0_i32, %c0_i32_0, %c0_i32_1 : i32, i32, i32
  }
  func.func @transform_1(%arg0: i32) -> (i32, i32) {
    %c0_i32 = arith.constant 0 : i32
    %c0_i32_0 = arith.constant 0 : i32
    %c0_i32_1 = arith.constant 0 : i32
    return %c0_i32, %c0_i32_0 : i32, i32
  }
  func.func @transform_2(%arg0: i32) -> (i32, i32) {
    %c0_i32 = arith.constant 0 : i32
    %c0_i32_0 = arith.constant 0 : i32
    %c0_i32_1 = arith.constant 0 : i32
    return %c0_i32, %c0_i32_0 : i32, i32
  }
  func.func @transform_3(%arg0: i32) -> (i32, i32) {
    %c0_i32 = arith.constant 0 : i32
    %c0_i32_0 = arith.constant 0 : i32
    %c0_i32_1 = arith.constant 0 : i32
    return %c0_i32, %c0_i32_0 : i32, i32
  }
  func.func @transform_4(%arg0: i32) -> (i32, i32) {
    %c0_i32 = arith.constant 0 : i32
    %c0_i32_0 = arith.constant 0 : i32
    %c0_i32_1 = arith.constant 0 : i32
    return %c0_i32, %c0_i32_0 : i32, i32
  }
  func.func @transform_5(%arg0: i32) -> (i32, i32) {
    %c0_i32 = arith.constant 0 : i32
    %c0_i32_0 = arith.constant 0 : i32
    %c0_i32_1 = arith.constant 0 : i32
    return %c0_i32, %c0_i32_0 : i32, i32
  }
  func.func @transform_6(%arg0: i32) -> (i32, i32) {
    %c0_i32 = arith.constant 0 : i32
    %c0_i32_0 = arith.constant 0 : i32
    %c0_i32_1 = arith.constant 0 : i32
    return %c0_i32, %c0_i32_0 : i32, i32
  }
}

</mosaic_0001>

<llo_original>
// kernel: cnn_forward.1
$region0: #{cnn_forward.1}
  #allocation0 [shape = 'u32[]', space=smem, size = 0x4, offset = 0x4, fixed_abs, tag = 'smem constant byte address 0x4 - core index']
  #allocation1 [shape = 'u32[144,128]{1,0:T(1,128)}', space=vmem, size = 0x12000, scoped, tag = 'internal scratch']
  %s0 = inlined_call_operand.vmem [shape: s32[5,48,1], index: 0, kind: input, shape index: {}]
  %s1 = inlined_call_operand.vmem [shape: f32[640,24], index: 1, kind: input, shape index: {}]
  %s2 = inlined_call_operand.vmem [shape: f32[1,24], index: 2, kind: input, shape index: {}]
  %s3 = inlined_call_operand.vmem [shape: f32[48,24], index: 3, kind: input, shape index: {}]
  %s4 = inlined_call_operand.vmem [shape: f32[24,128], index: 4, kind: input, shape index: {}]
  %s5 = inlined_call_operand.vmem [shape: f32[1,128], index: 5, kind: input, shape index: {}]
  %s6 = inlined_call_operand.vmem [shape: f32[8,128], index: 6, kind: output, shape index: {}]
  %s7 = sld [smem:[#allocation0]]
  $region34: #{cnn_forward.1} parent=0
    _
  %s9 = ssub.s32 1, %s7
  %s10 = scalar_select 0, %s9, %s7
  // Predicated region
  $region2: #{cnn_forward.1} parent=0 // pred_check
    _
  $region3: #{cnn_forward.1} parent=0 // pred_check_branch
    %12 = sbr.rel (0) target = $region5
  $region4: #{cnn_forward.1} parent=0 // pred_region
    _
  $region5: #{cnn_forward.1} parent=0 // pred_fallthru
    _
  // Predicated region
  $region6: #{cnn_forward.1} parent=0 // pred_check
    _
  $region7: #{cnn_forward.1} parent=0 // pred_check_branch
    %14 = sbr.rel (0) target = $region9
  $region8: #{cnn_forward.1} parent=0 // pred_region
    _
  $region9: #{cnn_forward.1} parent=0 // pred_fallthru
    _
  // Predicated region
  $region10: #{cnn_forward.1} parent=0 // pred_check
    _
  $region11: #{cnn_forward.1} parent=0 // pred_check_branch
    %16 = sbr.rel (0) target = $region13
  $region12: #{cnn_forward.1} parent=0 // pred_region
    _
  $region13: #{cnn_forward.1} parent=0 // pred_fallthru
    _
  // Predicated region
  $region14: #{cnn_forward.1} parent=0 // pred_check
    _
  $region15: #{cnn_forward.1} parent=0 // pred_check_branch
    %18 = sbr.rel (0) target = $region17
  $region16: #{cnn_forward.1} parent=0 // pred_region
    _
  $region17: #{cnn_forward.1} parent=0 // pred_fallthru
    _
  // Predicated region
  $region18: #{cnn_forward.1} parent=0 // pred_check
    _
  $region19: #{cnn_forward.1} parent=0 // pred_check_branch
    %20 = sbr.rel (0) target = $region21
  $region20: #{cnn_forward.1} parent=0 // pred_region
    _
  $region21: #{cnn_forward.1} parent=0 // pred_fallthru
    _
  // Predicated region
  $region22: #{cnn_forward.1} parent=0 // pred_check
    _
  $region23: #{cnn_forward.1} parent=0 // pred_check_branch
    %22 = sbr.rel (0) target = $region25
  $region24: #{cnn_forward.1} parent=0 // pred_region
    _
  $region25: #{cnn_forward.1} parent=0 // pred_fallthru
    _
  %v23 = vlaneseq
  %v24 = vand.u32 %v23, 127
  %v25 = vld [vmem:[%s0] sm:$0xff]
  %v26 = vld [vmem:[%s0 + $0x8] sm:$0xff]
  %v27 = vld [vmem:[%s0 + $0x10] sm:$0xff]
  %v28 = vld [vmem:[%s0 + $0x18] sm:$0xff]
  %v29 = vld [vmem:[%s0 + $0x20] sm:$0xff]
  %v30 = vld [vmem:[%s0 + $0x28] sm:$0xff]
  %31 = vset.pattern.permute.xlu0 0
  %32 = vperm.xlu0 %31, %v25
  %v33 = vpop.permute.xlu0 %32
  %34 = vset.pattern.permute.xlu0 0
  %35 = vperm.xlu0 %34, %v26
  %v36 = vpop.permute.xlu0 %35
  %37 = vset.pattern.permute.xlu0 0
  %38 = vperm.xlu0 %37, %v27
  %v39 = vpop.permute.xlu0 %38
  %40 = vset.pattern.permute.xlu0 0
  %41 = vperm.xlu0 %40, %v28
  %v42 = vpop.permute.xlu0 %41
  %43 = vset.pattern.permute.xlu0 0
  %44 = vperm.xlu0 %43, %v29
  %v45 = vpop.permute.xlu0 %44
  %46 = vset.pattern.permute.xlu0 0
  %47 = vperm.xlu0 %46, %v30
  %v48 = vpop.permute.xlu0 %47
  %vm49 = vcmp.eq.s32.totalorder %v24, %v33
  %vm50 = vcmp.eq.s32.totalorder %v24, %v36
  %vm51 = vcmp.eq.s32.totalorder %v24, %v39
  %vm52 = vcmp.eq.s32.totalorder %v24, %v42
  %vm53 = vcmp.eq.s32.totalorder %v24, %v45
  %vm54 = vcmp.eq.s32.totalorder %v24, %v48
  %v55 = vsel %vm49, 1, 0
  %v56 = vsel %vm50, 1, 0
  %v57 = vsel %vm51, 1, 0
  %v58 = vsel %vm52, 1, 0
  %v59 = vsel %vm53, 1, 0
  %v60 = vsel %vm54, 1, 0
  %v61 = vcvt.s32.f32 %v55
  %v62 = vcvt.s32.f32 %v56
  %v63 = vcvt.s32.f32 %v57
  %v64 = vcvt.s32.f32 %v58
  %v65 = vcvt.s32.f32 %v59
  %v66 = vcvt.s32.f32 %v60
  %v67 = vld [vmem:[%s1] sm:$0xff]
  %v68 = vld [vmem:[%s1 + $0x8] sm:$0xff]
  %v69 = vld [vmem:[%s1 + $0x10] sm:$0xff]
  %v70 = vld [vmem:[%s1 + $0x18] sm:$0xff]
  %v71 = vld [vmem:[%s1 + $0x20] sm:$0xff]
  %v72 = vld [vmem:[%s1 + $0x28] sm:$0xff]
  %v73 = vld [vmem:[%s1 + $0x30] sm:$0xff]
  %v74 = vld [vmem:[%s1 + $0x38] sm:$0xff]
  %v75 = vld [vmem:[%s1 + $0x40] sm:$0xff]
  %v76 = vld [vmem:[%s1 + $0x48] sm:$0xff]
  %v77 = vld [vmem:[%s1 + $0x50] sm:$0xff]
  %v78 = vld [vmem:[%s1 + $0x58] sm:$0xff]
  %v79 = vld [vmem:[%s1 + $0x60] sm:$0xff]
  %v80 = vld [vmem:[%s1 + $0x68] sm:$0xff]
  %v81 = vld [vmem:[%s1 + $0x70] sm:$0xff]
  %v82 = vld [vmem:[%s1 + $0x78] sm:$0xff]
  %s83 = scalar_lea.vmem %s0, 48
  %v84 = vld [vmem:[%s83] sm:$0xff]
  %v85 = vld [vmem:[%s83 + $0x8] sm:$0xff]
  %v86 = vld [vmem:[%s83 + $0x10] sm:$0xff]
  %v87 = vld [vmem:[%s83 + $0x18] sm:$0xff]
  %v88 = vld [vmem:[%s83 + $0x20] sm:$0xff]
  %v89 = vld [vmem:[%s83 + $0x28] sm:$0xff]
  %90 = vset.pattern.permute.xlu0 0
  %91 = vperm.xlu0 %90, %v84
  %v92 = vpop.permute.xlu0 %91
  %93 = vset.pattern.permute.xlu0 0
  %94 = vperm.xlu0 %93, %v85
  %v95 = vpop.permute.xlu0 %94
  %96 = vset.pattern.permute.xlu0 0
  %97 = vperm.xlu0 %96, %v86
  %v98 = vpop.permute.xlu0 %97
  %99 = vset.pattern.permute.xlu0 0
  %100 = vperm.xlu0 %99, %v87
  %v101 = vpop.permute.xlu0 %100
  %102 = vset.pattern.permute.xlu0 0
  %103 = vperm.xlu0 %102, %v88
  %v104 = vpop.permute.xlu0 %103
  %105 = vset.pattern.permute.xlu0 0
  %106 = vperm.xlu0 %105, %v89
  %v107 = vpop.permute.xlu0 %106
  %vm108 = vcmp.eq.s32.totalorder %v24, %v92
  %vm109 = vcmp.eq.s32.totalorder %v24, %v95
  %vm110 = vcmp.eq.s32.totalorder %v24, %v98
  %vm111 = vcmp.eq.s32.totalorder %v24, %v101
  %vm112 = vcmp.eq.s32.totalorder %v24, %v104
  %vm113 = vcmp.eq.s32.totalorder %v24, %v107
  %v114 = vsel %vm108, 1, 0
  %v115 = vsel %vm109, 1, 0
  %v116 = vsel %vm110, 1, 0
  %v117 = vsel %vm111, 1, 0
  %v118 = vsel %vm112, 1, 0
  %v119 = vsel %vm113, 1, 0
  %v120 = vcvt.s32.f32 %v114
  %v121 = vcvt.s32.f32 %v115
  %v122 = vcvt.s32.f32 %v116
  %v123 = vcvt.s32.f32 %v117
  %v124 = vcvt.s32.f32 %v118
  %v125 = vcvt.s32.f32 %v119
  %v126 = vld [vmem:[%s1 + $0x80] sm:$0xff]
  %v127 = vld [vmem:[%s1 + $0x88] sm:$0xff]
  %v128 = vld [vmem:[%s1 + $0x90] sm:$0xff]
  %v129 = vld [vmem:[%s1 + $0x98] sm:$0xff]
  %v130 = vld [vmem:[%s1 + $0xa0] sm:$0xff]
  %v131 = vld [vmem:[%s1 + $0xa8] sm:$0xff]
  %v132 = vld [vmem:[%s1 + $0xb0] sm:$0xff]
  %v133 = vld [vmem:[%s1 + $0xb8] sm:$0xff]
  %v134 = vld [vmem:[%s1 + $0xc0] sm:$0xff]
  %v135 = vld [vmem:[%s1 + $0xc8] sm:$0xff]
  %v136 = vld [vmem:[%s1 + $0xd0] sm:$0xff]
  %v137 = vld [vmem:[%s1 + $0xd8] sm:$0xff]
  %v138 = vld [vmem:[%s1 + $0xe0] sm:$0xff]
  %v139 = vld [vmem:[%s1 + $0xe8] sm:$0xff]
  %v140 = vld [vmem:[%s1 + $0xf0] sm:$0xff]
  %v141 = vld [vmem:[%s1 + $0xf8] sm:$0xff]
  %142 = vmatprep.subr.mxu0 0.0
  %143 = vmatpush1.msra.mxu0 %v126
  %144 = vmatprep.subr.mxu0 0.0
  %145 = vmatpush1.msra.mxu0 %v127
  %146 = vmatprep.subr.mxu0 0.0
  %147 = vmatpush1.msra.mxu0 %v128
  %148 = vmatprep.subr.mxu0 0.0
  %149 = vmatpush1.msra.mxu0 %v129
  %150 = vmatprep.subr.mxu0 0.0
  %151 = vmatpush1.msra.mxu0 %v130
  %152 = vmatprep.subr.mxu0 0.0
  %153 = vmatpush1.msra.mxu0 %v131
  %154 = vmatprep.subr.mxu0 0.0
  %155 = vmatpush1.msra.mxu0 %v132
  %156 = vmatprep.subr.mxu0 0.0
  %157 = vmatpush1.msra.mxu0 %v133
  %158 = vmatprep.subr.mxu0 0.0
  %159 = vmatpush1.msra.mxu0 %v134
  %160 = vmatprep.subr.mxu0 0.0
  %161 = vmatpush1.msra.mxu0 %v135
  %162 = vmatprep.subr.mxu0 0.0
  %163 = vmatpush1.msra.mxu0 %v136
  %164 = vmatprep.subr.mxu0 0.0
  %165 = vmatpush1.msra.mxu0 %v137
  %166 = vmatprep.subr.mxu0 0.0
  %167 = vmatpush1.msra.mxu0 %v138
  %168 = vmatprep.subr.mxu0 0.0
  %169 = vmatpush1.msra.mxu0 %v139
  %170 = vmatprep.subr.mxu0 0.0
  %171 = vmatpush1.msra.mxu0 %v140
  %172 = vmatprep.subr.mxu0 0.0
  %173 = vmatpush1.msra.mxu0 %v141
  %174 = vmatprep.subr.mxu0 0.0
  %175 = vmatpush1.msra.mxu0 0.0
  %176 = vmatprep.subr.mxu0 0.0
  %177 = vmatpush1.msra.mxu0 0.0
  %178 = vmatprep.subr.mxu0 0.0
  %179 = vmatpush1.msra.mxu0 0.0
  %180 = vmatprep.subr.mxu0 0.0
  %181 = vmatpush1.msra.mxu0 0.0
  %182 = vmatprep.subr.mxu0 0.0
  %183 = vmatpush1.msra.mxu0 0.0
  %184 = vmatprep.subr.mxu0 0.0
  %185 = vmatpush1.msra.mxu0 0.0
  %186 = vmatprep.subr.mxu0 0.0
  %187 = vmatpush1.msra.mxu0 0.0
  %188 = vmatprep.subr.mxu0 0.0
  %189 = vmatpush1.msra.mxu0 0.0
  %190 = vmatprep.subr.mxu0 0.0
  %191 = vmatpush1.msra.mxu0 0.0
  %192 = vmatprep.subr.mxu0 0.0
  %193 = vmatpush1.msra.mxu0 0.0
  %194 = vmatprep.subr.mxu0 0.0
  %195 = vmatpush1.msra.mxu0 0.0
  %196 = vmatprep.subr.mxu0 0.0
  %197 = vmatpush1.msra.mxu0 0.0
  %198 = vmatprep.subr.mxu0 0.0
  %199 = vmatpush1.msra.mxu0 0.0
  %200 = vmatprep.subr.mxu0 0.0
  %201 = vmatpush1.msra.mxu0 0.0
  %202 = vmatprep.subr.mxu0 0.0
  %203 = vmatpush1.msra.mxu0 0.0
  %204 = vmatprep.subr.mxu0 0.0
  %205 = vmatpush1.msra.mxu0 0.0
  %206 = vmatprep.mubr.f32.mxu0 0.0
  %207 = vmatmul.mubr.f32.gmra.mrb[0].mxu0 %v120
  %v208 = vpop.f32.mrb[0].mxu0
  %v209 = vadd.f32 0.0, %v208
  %v210 = vpop.f32.mrb[0].mxu0
  %211 = vmatprep.mubr.f32.mxu0 0.0
  %212 = vmatmul.mubr.f32.gmra.mrb[0].mxu0 %v121
  %v213 = vpop.f32.mrb[0].mxu0
  %v214 = vadd.f32 0.0, %v213
  %v215 = vpop.f32.mrb[0].mxu0
  %216 = vmatprep.mubr.f32.mxu0 0.0
  %217 = vmatmul.mubr.f32.gmra.mrb[0].mxu0 %v122
  %v218 = vpop.f32.mrb[0].mxu0
  %v219 = vadd.f32 0.0, %v218
  %v220 = vpop.f32.mrb[0].mxu0
  %221 = vmatprep.mubr.f32.mxu0 0.0
  %222 = vmatmul.mubr.f32.gmra.mrb[0].mxu0 %v123
  %v223 = vpop.f32.mrb[0].mxu0
  %v224 = vadd.f32 0.0, %v223
  %v225 = vpop.f32.mrb[0].mxu0
  %226 = vmatprep.mubr.f32.mxu0 0.0
  %227 = vmatmul.mubr.f32.gmra.mrb[0].mxu0 %v124
  %v228 = vpop.f32.mrb[0].mxu0
  %v229 = vadd.f32 0.0, %v228
  %v230 = vpop.f32.mrb[0].mxu0
  %231 = vmatprep.mubr.f32.mxu0 0.0
  %232 = vmatmul.mubr.f32.gmra.mrb[0].mxu0 %v125
  %v233 = vpop.f32.mrb[0].mxu0
  %v234 = vadd.f32 0.0, %v233
  %v235 = vpop.f32.mrb[0].mxu0
  %236 = vdwg.mxu0
  %237 = vmatprep.subr.mxu0 0.0
  %238 = vmatpush1.msra.mxu0 %v67
  %239 = vmatprep.subr.mxu0 0.0
  %240 = vmatpush1.msra.mxu0 %v68
  %241 = vmatprep.subr.mxu0 0.0
  %242 = vmatpush1.msra.mxu0 %v69
  %243 = vmatprep.subr.mxu0 0.0
  %244 = vmatpush1.msra.mxu0 %v70
  %245 = vmatprep.subr.mxu0 0.0
  %246 = vmatpush1.msra.mxu0 %v71
  %247 = vmatprep.subr.mxu0 0.0
  %248 = vmatpush1.msra.mxu0 %v72
  %249 = vmatprep.subr.mxu0 0.0
  %250 = vmatpush1.msra.mxu0 %v73
  %251 = vmatprep.subr.mxu0 0.0
  %252 = vmatpush1.msra.mxu0 %v74
  %253 = vmatprep.subr.mxu0 0.0
  %254 = vmatpush1.msra.mxu0 %v75
  %255 = vmatprep.subr.mxu0 0.0
  %256 = vmatpush1.msra.mxu0 %v76
  %257 = vmatprep.subr.mxu0 0.0
  %258 = vmatpush1.msra.mxu0 %v77
  %259 = vmatprep.subr.mxu0 0.0
  %260 = vmatpush1.msra.mxu0 %v78
  %261 = vmatprep.subr.mxu0 0.0
  %262 = vmatpush1.msra.mxu0 %v79
  %263 = vmatprep.subr.mxu0 0.0
  %264 = vmatpush1.msra.mxu0 %v80
  %265 = vmatprep.subr.mxu0 0.0
  %266 = vmatpush1.msra.mxu0 %v81
  %267 = vmatprep.subr.mxu0 0.0
  %268 = vmatpush1.msra.mxu0 %v82
  %269 = vmatprep.subr.mxu0 0.0
  %270 = vmatpush1.msra.mxu0 0.0
  %271 = vmatprep.subr.mxu0 0.0
  %272 = vmatpush1.msra.mxu0 0.0
  %273 = vmatprep.subr.mxu0 0.0
  %274 = vmatpush1.msra.mxu0 0.0
  %275 = vmatprep.subr.mxu0 0.0
  %276 = vmatpush1.msra.mxu0 0.0
  %277 = vmatprep.subr.mxu0 0.0
  %278 = vmatpush1.msra.mxu0 0.0
  %279 = vmatprep.subr.mxu0 0.0
  %280 = vmatpush1.msra.mxu0 0.0
  %281 = vmatprep.subr.mxu0 0.0
  %282 = vmatpush1.msra.mxu0 0.0
  %283 = vmatprep.subr.mxu0 0.0
  %284 = vmatpush1.msra.mxu0 0.0
  %285 = vmatprep.subr.mxu0 0.0
  %286 = vmatpush1.msra.mxu0 0.0
  %287 = vmatprep.subr.mxu0 0.0
  %288 = vmatpush1.msra.mxu0 0.0
  %289 = vmatprep.subr.mxu0 0.0
  %290 = vmatpush1.msra.mxu0 0.0
  %291 = vmatprep.subr.mxu0 0.0
  %292 = vmatpush1.msra.mxu0 0.0
  %293 = vmatprep.subr.mxu0 0.0
  %294 = vmatpush1.msra.mxu0 0.0
  %295 = vmatprep.subr.mxu0 0.0
  %296 = vmatpush1.msra.mxu0 0.0
  %297 = vmatprep.subr.mxu0 0.0
  %298 = vmatpush1.msra.mxu0 0.0
  %299 = vmatprep.subr.mxu0 0.0
  %300 = vmatpush1.msra.mxu0 0.0
  %301 = vmatprep.mubr.f32.mxu0 0.0
  %302 = vmatmul.mubr.f32.gmra.mrb[0].mxu0 %v61
  %v303 = vpop.f32.mrb[0].mxu0
  %v304 = vadd.f32 %v209, %v303
  %v305 = vpop.f32.mrb[0].mxu0
  %306 = vmatprep.mubr.f32.mxu0 0.0
  %307 = vmatmul.mubr.f32.gmra.mrb[0].mxu0 %v62
  %v308 = vpop.f32.mrb[0].mxu0
  %v309 = vadd.f32 %v214, %v308
  %v310 = vpop.f32.mrb[0].mxu0
  %311 = vmatprep.mubr.f32.mxu0 0.0
  %312 = vmatmul.mubr.f32.gmra.mrb[0].mxu0 %v63
  %v313 = vpop.f32.mrb[0].mxu0
  %v314 = vadd.f32 %v219, %v313
  %v315 = vpop.f32.mrb[0].mxu0
  %316 = vmatprep.mubr.f32.mxu0 0.0
  %317 = vmatmul.mubr.f32.gmra.mrb[0].mxu0 %v64
  %v318 = vpop.f32.mrb[0].mxu0
  %v319 = vadd.f32 %v224, %v318
  %v320 = vpop.f32.mrb[0].mxu0
  %321 = vmatprep.mubr.f32.mxu0 0.0
  %322 = vmatmul.mubr.f32.gmra.mrb[0].mxu0 %v65
  %v323 = vpop.f32.mrb[0].mxu0
  %v324 = vadd.f32 %v229, %v323
  %v325 = vpop.f32.mrb[0].mxu0
  %326 = vmatprep.mubr.f32.mxu0 0.0
  %327 = vmatmul.mubr.f32.gmra.mrb[0].mxu0 %v66
  %v328 = vpop.f32.mrb[0].mxu0
  %v329 = vadd.f32 %v234, %v328
  %v330 = vpop.f32.mrb[0].mxu0
  %331 = vdwg.mxu0
  %s332 = scalar_lea.vmem %s0, 96
  %v333 = vld [vmem:[%s332] sm:$0xff]
  %v334 = vld [vmem:[%s332 + $0x8] sm:$0xff]
  %v335 = vld [vmem:[%s332 + $0x10] sm:$0xff]
  %v336 = vld [vmem:[%s332 + $0x18] sm:$0xff]
  %v337 = vld [vmem:[%s332 + $0x20] sm:$0xff]
  %v338 = vld [vmem:[%s332 + $0x28] sm:$0xff]
  %339 = vset.pattern.permute.xlu0 0
  %340 = vperm.xlu0 %339, %v333
  %v341 = vpop.permute.xlu0 %340
  %342 = vset.pattern.permute.xlu0 0
  %343 = vperm.xlu0 %342, %v334
  %v344 = vpop.permute.xlu0 %343
  %345 = vset.pattern.permute.xlu0 0
  %346 = vperm.xlu0 %345, %v335
  %v347 = vpop.permute.xlu0 %346
  %348 = vset.pattern.permute.xlu0 0
  %349 = vperm.xlu0 %348, %v336
  %v350 = vpop.permute.xlu0 %349
  %351 = vset.pattern.permute.xlu0 0
  %352 = vperm.xlu0 %351, %v337
  %v353 = vpop.permute.xlu0 %352
  %354 = vset.pattern.permute.xlu0 0
  %355 = vperm.xlu0 %354, %v338
  %v356 = vpop.permute.xlu0 %355
  %vm357 = vcmp.eq.s32.totalorder %v24, %v341
  %vm358 = vcmp.eq.s32.totalorder %v24, %v344
  %vm359 = vcmp.eq.s32.totalorder %v24, %v347
  %vm360 = vcmp.eq.s32.totalorder %v24, %v350
  %vm361 = vcmp.eq.s32.totalorder %v24, %v353
  %vm362 = vcmp.eq.s32.totalorder %v24, %v356
  %v363 = vsel %vm357, 1, 0
  %v364 = vsel %vm358, 1, 0
  %v365 = vsel %vm359, 1, 0
  %v366 = vsel %vm360, 1, 0
  %v367 = vsel %vm361, 1, 0
  %v368 = vsel %vm362, 1, 0
  %v369 = vcvt.s32.f32 %v363
  %v370 = vcvt.s32.f32 %v364
  %v371 = vcvt.s32.f32 %v365
  %v372 = vcvt.s32.f32 %v366
  %v373 = vcvt.s32.f32 %v367
  %v374 = vcvt.s32.f32 %v368
  %v375 = vld [vmem:[%s1 + $0x100] sm:$0xff]
  %v376 = vld [vmem:[%s1 + $0x108] sm:$0xff]
  %v377 = vld [vmem:[%s1 + $0x110] sm:$0xff]
  %v378 = vld [vmem:[%s1 + $0x118] sm:$0xff]
  %v379 = vld [vmem:[%s1 + $0x120] sm:$0xff]
  %v380 = vld [vmem:[%s1 + $0x128] sm:$0xff]
  %v381 = vld [vmem:[%s1 + $0x130] sm:$0xff]
  %v382 = vld [vmem:[%s1 + $0x138] sm:$0xff]
  %v383 = vld [vmem:[%s1 + $0x140] sm:$0xff]
  %v384 = vld [vmem:[%s1 + $0x148] sm:$0xff]
  %v385 = vld [vmem:[%s1 + $0x150] sm:$0xff]
  %v386 = vld [vmem:[%s1 + $0x158] sm:$0xff]
  %v387 = vld [vmem:[%s1 + $0x160] sm:$0xff]
  %v388 = vld [vmem:[%s1 + $0x168] sm:$0xff]
  %v389 = vld [vmem:[%s1 + $0x170] sm:$0xff]
  %v390 = vld [vmem:[%s1 + $0x178] sm:$0xff]
  %391 = vmatprep.subr.mxu0 0.0
  %392 = vmatpush1.msra.mxu0 %v375
  %393 = vmatprep.subr.mxu0 0.0
  %394 = vmatpush1.msra.mxu0 %v376
  %395 = vmatprep.subr.mxu0 0.0
  %396 = vmatpush1.msra.mxu0 %v377
  %397 = vmatprep.subr.mxu0 0.0
  %398 = vmatpush1.msra.mxu0 %v378
  %399 = vmatprep.subr.mxu0 0.0
  %400 = vmatpush1.msra.mxu0 %v379
  %401 = vmatprep.subr.mxu0 0.0
  %402 = vmatpush1.msra.mxu0 %v380
  %403 = vmatprep.subr.mxu0 0.0
  %404 = vmatpush1.msra.mxu0 %v381
  %405 = vmatprep.subr.mxu0 0.0
  %406 = vmatpush1.msra.mxu0 %v382
  %407 = vmatprep.subr.mxu0 0.0
  %408 = vmatpush1.msra.mxu0 %v383
  %409 = vmatprep.subr.mxu0 0.0
  %410 = vmatpush1.msra.mxu0 %v384
  %411 = vmatprep.subr.mxu0 0.0
  %412 = vmatpush1.msra.mxu0 %v385
  %413 = vmatprep.subr.mxu0 0.0
  %414 = vmatpush1.msra.mxu0 %v386
  %415 = vmatprep.subr.mxu0 0.0
  %416 = vmatpush1.msra.mxu0 %v387
  %417 = vmatprep.subr.mxu0 0.0
  %418 = vmatpush1.msra.mxu0 %v388
  %419 = vmatprep.subr.mxu0 0.0
  %420 = vmatpush1.msra.mxu0 %v389
  %421 = vmatprep.subr.mxu0 0.0
  %422 = vmatpush1.msra.mxu0 %v390
  %423 = vmatprep.subr.mxu0 0.0
  %424 = vmatpush1.msra.mxu0 0.0
  %425 = vmatprep.subr.mxu0 0.0
  %426 = vmatpush1.msra.mxu0 0.0
  %427 = vmatprep.subr.mxu0 0.0
  %428 = vmatpush1.msra.mxu0 0.0
  %429 = vmatprep.subr.mxu0 0.0
  %430 = vmatpush1.msra.mxu0 0.0
  %431 = vmatprep.subr.mxu0 0.0
  %432 = vmatpush1.msra.mxu0 0.0
  %433 = vmatprep.subr.mxu0 0.0
  %434 = vmatpush1.msra.mxu0 0.0
  %435 = vmatprep.subr.mxu0 0.0
  %436 = vmatpush1.msra.mxu0 0.0
  %437 = vmatprep.subr.mxu0 0.0
  %438 = vmatpush1.msra.mxu0 0.0
  %439 = vmatprep.subr.mxu0 0.0
  %440 = vmatpush1.msra.mxu0 0.0
  %441 = vmatprep.subr.mxu0 0.0
  %442 = vmatpush1.msra.mxu0 0.0
  %443 = vmatprep.subr.mxu0 0.0
  %444 = vmatpush1.msra.mxu0 0.0
  %445 = vmatprep.subr.mxu0 0.0
  %446 = vmatpush1.msra.mxu0 0.0
  %447 = vmatprep.subr.mxu0 0.0
  %448 = vmatpush1.msra.mxu0 0.0
  %449 = vmatprep.subr.mxu0 0.0
  %450 = vmatpush1.msra.mxu0 0.0
  %451 = vmatprep.subr.mxu0 0.0
  %452 = vmatpush1.msra.mxu0 0.0
  %453 = vmatprep.subr.mxu0 0.0
  %454 = vmatpush1.msra.mxu0 0.0
  %455 = vmatprep.mubr.f32.mxu0 0.0
  %456 = vmatmul.mubr.f32.gmra.mrb[0].mxu0 %v369
  %v457 = vpop.f32.mrb[0].mxu0
  %v458 = vadd.f32 0.0, %v457
  %v459 = vpop.f32.mrb[0].mxu0
  %460 = vmatprep.mubr.f32.mxu0 0.0
  %461 = vmatmul.mubr.f32.gmra.mrb[0].mxu0 %v370
  %v462 = vpop.f32.mrb[0].mxu0
  %v463 = vadd.f32 0.0, %v462
  %v464 = vpop.f32.mrb[0].mxu0
  %465 = vmatprep.mubr.f32.mxu0 0.0
  %466 = vmatmul.mubr.f32.gmra.mrb[0].mxu0 %v371
  %v467 = vpop.f32.mrb[0].mxu0
  %v468 = vadd.f32 0.0, %v467
  %v469 = vpop.f32.mrb[0].mxu0
  %470 = vmatprep.mubr.f32.mxu0 0.0
  %471 = vmatmul.mubr.f32.gmra.mrb[0].mxu0 %v372
  %v472 = vpop.f32.mrb[0].mxu0
  %v473 = vadd.f32 0.0, %v472
  %v474 = vpop.f32.mrb[0].mxu0
  %475 = vmatprep.mubr.f32.mxu0 0.0
  %476 = vmatmul.mubr.f32.gmra.mrb[0].mxu0 %v373
  %v477 = vpop.f32.mrb[0].mxu0
  %v478 = vadd.f32 0.0, %v477
  %v479 = vpop.f32.mrb[0].mxu0
  %480 = vmatprep.mubr.f32.mxu0 0.0
  %481 = vmatmul.mubr.f32.gmra.mrb[0].mxu0 %v374
  %v482 = vpop.f32.mrb[0].mxu0
  %v483 = vadd.f32 0.0, %v482
  %v484 = vpop.f32.mrb[0].mxu0
  %485 = vdwg.mxu0
  %v486 = vadd.f32 %v304, %v458
  %v487 = vadd.f32 %v309, %v463
  %v488 = vadd.f32 %v314, %v468
  %v489 = vadd.f32 %v319, %v473
  %v490 = vadd.f32 %v324, %v478
  %v491 = vadd.f32 %v329, %v483
  %s492 = scalar_lea.vmem %s0, 144
  %v493 = vld [vmem:[%s492] sm:$0xff]
  %v494 = vld [vmem:[%s492 + $0x8] sm:$0xff]
  %v495 = vld [vmem:[%s492 + $0x10] sm:$0xff]
  %v496 = vld [vmem:[%s492 + $0x18] sm:$0xff]
  %v497 = vld [vmem:[%s492 + $0x20] sm:$0xff]
  %v498 = vld [vmem:[%s492 + $0x28] sm:$0xff]
  %499 = vset.pattern.permute.xlu0 0
  %500 = vperm.xlu0 %499, %v493
  %v501 = vpop.permute.xlu0 %500
  %502 = vset.pattern.permute.xlu0 0
  %503 = vperm.xlu0 %502, %v494
  %v504 = vpop.permute.xlu0 %503
  %505 = vset.pattern.permute.xlu0 0
  %506 = vperm.xlu0 %505, %v495
  %v507 = vpop.permute.xlu0 %506
  %508 = vset.pattern.permute.xlu0 0
  %509 = vperm.xlu0 %508, %v496
  %v510 = vpop.permute.xlu0 %509
  %511 = vset.pattern.permute.xlu0 0
  %512 = vperm.xlu0 %511, %v497
  %v513 = vpop.permute.xlu0 %512
  %514 = vset.pattern.permute.xlu0 0
  %515 = vperm.xlu0 %514, %v498
  %v516 = vpop.permute.xlu0 %515
  %vm517 = vcmp.eq.s32.totalorder %v24, %v501
  %vm518 = vcmp.eq.s32.totalorder %v24, %v504
  %vm519 = vcmp.eq.s32.totalorder %v24, %v507
  %vm520 = vcmp.eq.s32.totalorder %v24, %v510
  %vm521 = vcmp.eq.s32.totalorder %v24, %v513
  %vm522 = vcmp.eq.s32.totalorder %v24, %v516
  %v523 = vsel %vm517, 1, 0
  %v524 = vsel %vm518, 1, 0
  %v525 = vsel %vm519, 1, 0
  %v526 = vsel %vm520, 1, 0
  %v527 = vsel %vm521, 1, 0
  %v528 = vsel %vm522, 1, 0
  %v529 = vcvt.s32.f32 %v523
  %v530 = vcvt.s32.f32 %v524
  %v531 = vcvt.s32.f32 %v525
  %v532 = vcvt.s32.f32 %v526
  %v533 = vcvt.s32.f32 %v527
  %v534 = vcvt.s32.f32 %v528
  %v535 = vld [vmem:[%s1 + $0x180] sm:$0xff]
  %v536 = vld [vmem:[%s1 + $0x188] sm:$0xff]
  %v537 = vld [vmem:[%s1 + $0x190] sm:$0xff]
  %v538 = vld [vmem:[%s1 + $0x198] sm:$0xff]
  %v539 = vld [vmem:[%s1 + $0x1a0] sm:$0xff]
  %v540 = vld [vmem:[%s1 + $0x1a8] sm:$0xff]
  %v541 = vld [vmem:[%s1 + $0x1b0] sm:$0xff]
  %v542 = vld [vmem:[%s1 + $0x1b8] sm:$0xff]
  %v543 = vld [vmem:[%s1 + $0x1c0] sm:$0xff]
  %v544 = vld [vmem:[%s1 + $0x1c8] sm:$0xff]
  %v545 = vld [vmem:[%s1 + $0x1d0] sm:$0xff]
  %v546 = vld [vmem:[%s1 + $0x1d8] sm:$0xff]
  %v547 = vld [vmem:[%s1 + $0x1e0] sm:$0xff]
  %v548 = vld [vmem:[%s1 + $0x1e8] sm:$0xff]
  %v549 = vld [vmem:[%s1 + $0x1f0] sm:$0xff]
  %v550 = vld [vmem:[%s1 + $0x1f8] sm:$0xff]
  %551 = vmatprep.subr.mxu0 0.0
  %552 = vmatpush1.msra.mxu0 %v535
  %553 = vmatprep.subr.mxu0 0.0
  %554 = vmatpush1.msra.mxu0 %v536
  %555 = vmatprep.subr.mxu0 0.0
  %556 = vmatpush1.msra.mxu0 %v537
  %557 = vmatprep.subr.mxu0 0.0
  %558 = vmatpush1.msra.mxu0 %v538
  %559 = vmatprep.subr.mxu0 0.0
  %560 = vmatpush1.msra.mxu0 %v539
  %561 = vmatprep.subr.mxu0 0.0
  %562 = vmatpush1.msra.mxu0 %v540
  %563 = vmatprep.subr.mxu0 0.0
  %564 = vmatpush1.msra.mxu0 %v541
  %565 = vmatprep.subr.mxu0 0.0
  %566 = vmatpush1.msra.mxu0 %v542
  %567 = vmatprep.subr.mxu0 0.0
  %568 = vmatpush1.msra.mxu0 %v543
  %569 = vmatprep.subr.mxu0 0.0
  %570 = vmatpush1.msra.mxu0 %v544
  %571 = vmatprep.subr.mxu0 0.0
  %572 = vmatpush1.msra.mxu0 %v545
  %573 = vmatprep.subr.mxu0 0.0
  %574 = vmatpush1.msra.mxu0 %v546
  %575 = vmatprep.subr.mxu0 0.0
  %576 = vmatpush1.msra.mxu0 %v547
  %577 = vmatprep.subr.mxu0 0.0
  %578 = vmatpush1.msra.mxu0 %v548
  %579 = vmatprep.subr.mxu0 0.0
  %580 = vmatpush1.msra.mxu0 %v549
  %581 = vmatprep.subr.mxu0 0.0
  %582 = vmatpush1.msra.mxu0 %v550
  %583 = vmatprep.subr.mxu0 0.0
  %584 = vmatpush1.msra.mxu0 0.0
  %585 = vmatprep.subr.mxu0 0.0
  %586 = vmatpush1.msra.mxu0 0.0
  %587 = vmatprep.subr.mxu0 0.0
  %588 = vmatpush1.msra.mxu0 0.0
  %589 = vmatprep.subr.mxu0 0.0
  %590 = vmatpush1.msra.mxu0 0.0
  %591 = vmatprep.subr.mxu0 0.0
  %592 = vmatpush1.msra.mxu0 0.0
  %593 = vmatprep.subr.mxu0 0.0
  %594 = vmatpush1.msra.mxu0 0.0
  %595 = vmatprep.subr.mxu0 0.0
  %596 = vmatpush1.msra.mxu0 0.0
  %597 = vmatprep.subr.mxu0 0.0
  %598 = vmatpush1.msra.mxu0 0.0
  %599 = vmatprep.subr.mxu0 0.0
  %600 = vmatpush1.msra.mxu0 0.0
  %601 = vmatprep.subr.mxu0 0.0
  %602 = vmatpush1.msra.mxu0 0.0
  %603 = vmatprep.subr.mxu0 0.0
  %604 = vmatpush1.msra.mxu0 0.0
  %605 = vmatprep.subr.mxu0 0.0
  %606 = vmatpush1.msra.mxu0 0.0
  %607 = vmatprep.subr.mxu0 0.0
  %608 = vmatpush1.msra.mxu0 0.0
  %609 = vmatprep.subr.mxu0 0.0
  %610 = vmatpush1.msra.mxu0 0.0
  %611 = vmatprep.subr.mxu0 0.0
  %612 = vmatpush1.msra.mxu0 0.0
  %613 = vmatprep.subr.mxu0 0.0
  %614 = vmatpush1.msra.mxu0 0.0
  %615 = vmatprep.mubr.f32.mxu0 0.0
  %616 = vmatmul.mubr.f32.gmra.mrb[0].mxu0 %v529
  %v617 = vpop.f32.mrb[0].mxu0
  %v618 = vadd.f32 0.0, %v617
  %v619 = vpop.f32.mrb[0].mxu0
  %620 = vmatprep.mubr.f32.mxu0 0.0
  %621 = vmatmul.mubr.f32.gmra.mrb[0].mxu0 %v530
  %v622 = vpop.f32.mrb[0].mxu0
  %v623 = vadd.f32 0.0, %v622
  %v624 = vpop.f32.mrb[0].mxu0
  %625 = vmatprep.mubr.f32.mxu0 0.0
  %626 = vmatmul.mubr.f32.gmra.mrb[0].mxu0 %v531
  %v627 = vpop.f32.mrb[0].mxu0
  %v628 = vadd.f32 0.0, %v627
  %v629 = vpop.f32.mrb[0].mxu0
  %630 = vmatprep.mubr.f32.mxu0 0.0
  %631 = vmatmul.mubr.f32.gmra.mrb[0].mxu0 %v532
  %v632 = vpop.f32.mrb[0].mxu0
  %v633 = vadd.f32 0.0, %v632
  %v634 = vpop.f32.mrb[0].mxu0
  %635 = vmatprep.mubr.f32.mxu0 0.0
  %636 = vmatmul.mubr.f32.gmra.mrb[0].mxu0 %v533
  %v637 = vpop.f32.mrb[0].mxu0
  %v638 = vadd.f32 0.0, %v637
  %v639 = vpop.f32.mrb[0].mxu0
  %640 = vmatprep.mubr.f32.mxu0 0.0
  %641 = vmatmul.mubr.f32.gmra.mrb[0].mxu0 %v534
  %v642 = vpop.f32.mrb[0].mxu0
  %v643 = vadd.f32 0.0, %v642
  %v644 = vpop.f32.mrb[0].mxu0
  %645 = vdwg.mxu0
  %v646 = vadd.f32 %v486, %v618
  %v647 = vadd.f32 %v487, %v623
  %v648 = vadd.f32 %v488, %v628
  %v649 = vadd.f32 %v489, %v633
  %v650 = vadd.f32 %v490, %v638
  %v651 = vadd.f32 %v491, %v643
  %s652 = scalar_lea.vmem %s0, 192
  %v653 = vld [vmem:[%s652] sm:$0xff]
  %v654 = vld [vmem:[%s652 + $0x8] sm:$0xff]
  %v655 = vld [vmem:[%s652 + $0x10] sm:$0xff]
  %v656 = vld [vmem:[%s652 + $0x18] sm:$0xff]
  %v657 = vld [vmem:[%s652 + $0x20] sm:$0xff]
  %v658 = vld [vmem:[%s652 + $0x28] sm:$0xff]
  %659 = vset.pattern.permute.xlu0 0
  %660 = vperm.xlu0 %659, %v653
  %v661 = vpop.permute.xlu0 %660
  %662 = vset.pattern.permute.xlu0 0
  %663 = vperm.xlu0 %662, %v654
  %v664 = vpop.permute.xlu0 %663
  %665 = vset.pattern.permute.xlu0 0
  %666 = vperm.xlu0 %665, %v655
  %v667 = vpop.permute.xlu0 %666
  %668 = vset.pattern.permute.xlu0 0
  %669 = vperm.xlu0 %668, %v656
  %v670 = vpop.permute.xlu0 %669
  %671 = vset.pattern.permute.xlu0 0
  %672 = vperm.xlu0 %671, %v657
  %v673 = vpop.permute.xlu0 %672
  %674 = vset.pattern.permute.xlu0 0
  %675 = vperm.xlu0 %674, %v658
  %v676 = vpop.permute.xlu0 %675
  %vm677 = vcmp.eq.s32.totalorder %v24, %v661
  %vm678 = vcmp.eq.s32.totalorder %v24, %v664
  %vm679 = vcmp.eq.s32.totalorder %v24, %v667
  %vm680 = vcmp.eq.s32.totalorder %v24, %v670
  %vm681 = vcmp.eq.s32.totalorder %v24, %v673
  %vm682 = vcmp.eq.s32.totalorder %v24, %v676
  %v683 = vsel %vm677, 1, 0
  %v684 = vsel %vm678, 1, 0
  %v685 = vsel %vm679, 1, 0
  %v686 = vsel %vm680, 1, 0
  %v687 = vsel %vm681, 1, 0
  %v688 = vsel %vm682, 1, 0
  %v689 = vcvt.s32.f32 %v683
  %v690 = vcvt.s32.f32 %v684
  %v691 = vcvt.s32.f32 %v685
  %v692 = vcvt.s32.f32 %v686
  %v693 = vcvt.s32.f32 %v687
  %v694 = vcvt.s32.f32 %v688
  %v695 = vld [vmem:[%s1 + $0x200] sm:$0xff]
  %v696 = vld [vmem:[%s1 + $0x208] sm:$0xff]
  %v697 = vld [vmem:[%s1 + $0x210] sm:$0xff]
  %v698 = vld [vmem:[%s1 + $0x218] sm:$0xff]
  %v699 = vld [vmem:[%s1 + $0x220] sm:$0xff]
  %v700 = vld [vmem:[%s1 + $0x228] sm:$0xff]
  %v701 = vld [vmem:[%s1 + $0x230] sm:$0xff]
  %v702 = vld [vmem:[%s1 + $0x238] sm:$0xff]
  %v703 = vld [vmem:[%s1 + $0x240] sm:$0xff]
  %v704 = vld [vmem:[%s1 + $0x248] sm:$0xff]
  %v705 = vld [vmem:[%s1 + $0x250] sm:$0xff]
  %v706 = vld [vmem:[%s1 + $0x258] sm:$0xff]
  %v707 = vld [vmem:[%s1 + $0x260] sm:$0xff]
  %v708 = vld [vmem:[%s1 + $0x268] sm:$0xff]
  %v709 = vld [vmem:[%s1 + $0x270] sm:$0xff]
  %v710 = vld [vmem:[%s1 + $0x278] sm:$0xff]
  %711 = vmatprep.subr.mxu0 0.0
  %712 = vmatpush1.msra.mxu0 %v695
  %713 = vmatprep.subr.mxu0 0.0
  %714 = vmatpush1.msra.mxu0 %v696
  %715 = vmatprep.subr.mxu0 0.0
  %716 = vmatpush1.msra.mxu0 %v697
  %717 = vmatprep.subr.mxu0 0.0
  %718 = vmatpush1.msra.mxu0 %v698
  %719 = vmatprep.subr.mxu0 0.0
  %720 = vmatpush1.msra.mxu0 %v699
  %721 = vmatprep.subr.mxu0 0.0
  %722 = vmatpush1.msra.mxu0 %v700
  %723 = vmatprep.subr.mxu0 0.0
  %724 = vmatpush1.msra.mxu0 %v701
  %725 = vmatprep.subr.mxu0 0.0
  %726 = vmatpush1.msra.mxu0 %v702
  %727 = vmatprep.subr.mxu0 0.0
  %728 = vmatpush1.msra.mxu0 %v703
  %729 = vmatprep.subr.mxu0 0.0
  %730 = vmatpush1.msra.mxu0 %v704
  %731 = vmatprep.subr.mxu0 0.0
  %732 = vmatpush1.msra.mxu0 %v705
  %733 = vmatprep.subr.mxu0 0.0
  %734 = vmatpush1.msra.mxu0 %v706
  %735 = vmatprep.subr.mxu0 0.0
  %736 = vmatpush1.msra.mxu0 %v707
  %737 = vmatprep.subr.mxu0 0.0
  %738 = vmatpush1.msra.mxu0 %v708
  %739 = vmatprep.subr.mxu0 0.0
  %740 = vmatpush1.msra.mxu0 %v709
  %741 = vmatprep.subr.mxu0 0.0
  %742 = vmatpush1.msra.mxu0 %v710
  %743 = vmatprep.subr.mxu0 0.0
  %744 = vmatpush1.msra.mxu0 0.0
  %745 = vmatprep.subr.mxu0 0.0
  %746 = vmatpush1.msra.mxu0 0.0
  %747 = vmatprep.subr.mxu0 0.0
  %748 = vmatpush1.msra.mxu0 0.0
  %749 = vmatprep.subr.mxu0 0.0
  %750 = vmatpush1.msra.mxu0 0.0
  %751 = vmatprep.subr.mxu0 0.0
  %752 = vmatpush1.msra.mxu0 0.0
  %753 = vmatprep.subr.mxu0 0.0
  %754 = vmatpush1.msra.mxu0 0.0
  %755 = vmatprep.subr.mxu0 0.0
  %756 = vmatpush1.msra.mxu0 0.0
  %757 = vmatprep.subr.mxu0 0.0
  %758 = vmatpush1.msra.mxu0 0.0
  %759 = vmatprep.subr.mxu0 0.0
  %760 = vmatpush1.msra.mxu0 0.0
  %761 = vmatprep.subr.mxu0 0.0
  %762 = vmatpush1.msra.mxu0 0.0
  %763 = vmatprep.subr.mxu0 0.0
  %764 = vmatpush1.msra.mxu0 0.0
  %765 = vmatprep.subr.mxu0 0.0
  %766 = vmatpush1.msra.mxu0 0.0
  %767 = vmatprep.subr.mxu0 0.0
  %768 = vmatpush1.msra.mxu0 0.0
  %769 = vmatprep.subr.mxu0 0.0
  %770 = vmatpush1.msra.mxu0 0.0
  %771 = vmatprep.subr.mxu0 0.0
  %772 = vmatpush1.msra.mxu0 0.0
  %773 = vmatprep.subr.mxu0 0.0
  %774 = vmatpush1.msra.mxu0 0.0
  %775 = vmatprep.mubr.f32.mxu0 0.0
  %776 = vmatmul.mubr.f32.gmra.mrb[0].mxu0 %v689
  %v777 = vpop.f32.mrb[0].mxu0
  %v778 = vadd.f32 0.0, %v777
  %v779 = vpop.f32.mrb[0].mxu0
  %780 = vmatprep.mubr.f32.mxu0 0.0
  %781 = vmatmul.mubr.f32.gmra.mrb[0].mxu0 %v690
  %v782 = vpop.f32.mrb[0].mxu0
  %v783 = vadd.f32 0.0, %v782
  %v784 = vpop.f32.mrb[0].mxu0
  %785 = vmatprep.mubr.f32.mxu0 0.0
  %786 = vmatmul.mubr.f32.gmra.mrb[0].mxu0 %v691
  %v787 = vpop.f32.mrb[0].mxu0
  %v788 = vadd.f32 0.0, %v787
  %v789 = vpop.f32.mrb[0].mxu0
  %790 = vmatprep.mubr.f32.mxu0 0.0
  %791 = vmatmul.mubr.f32.gmra.mrb[0].mxu0 %v692
  %v792 = vpop.f32.mrb[0].mxu0
  %v793 = vadd.f32 0.0, %v792
  %v794 = vpop.f32.mrb[0].mxu0
  %795 = vmatprep.mubr.f32.mxu0 0.0
  %796 = vmatmul.mubr.f32.gmra.mrb[0].mxu0 %v693
  %v797 = vpop.f32.mrb[0].mxu0
  %v798 = vadd.f32 0.0, %v797
  %v799 = vpop.f32.mrb[0].mxu0
  %800 = vmatprep.mubr.f32.mxu0 0.0
  %801 = vmatmul.mubr.f32.gmra.mrb[0].mxu0 %v694
  %v802 = vpop.f32.mrb[0].mxu0
  %v803 = vadd.f32 0.0, %v802
  %v804 = vpop.f32.mrb[0].mxu0
  %805 = vdwg.mxu0
  %v806 = vadd.f32 %v646, %v778
  %v807 = vadd.f32 %v647, %v783
  %v808 = vadd.f32 %v648, %v788
  %v809 = vadd.f32 %v649, %v793
  %v810 = vadd.f32 %v650, %v798
  %v811 = vadd.f32 %v651, %v803
  %v812 = vld [vmem:[%s2] sm:$0x1]
  %v814 = vlaneseq
  %v815 = vshrl.u32 %v814, 7
  %v816 = vsub.s32 0, %v815
  %v817 = vrot.slane %v812, %v816
  %v819 = vadd.f32 %v806, %v817
  %v820 = vadd.f32 %v807, %v817
  %v821 = vadd.f32 %v808, %v817
  %v822 = vadd.f32 %v809, %v817
  %v823 = vadd.f32 %v810, %v817
  %v824 = vadd.f32 %v811, %v817
  %v825 = vmax.f32 %v819, 0.0
  %v826 = vmax.f32 %v820, 0.0
  %v827 = vmax.f32 %v821, 0.0
  %v828 = vmax.f32 %v822, 0.0
  %v829 = vmax.f32 %v823, 0.0
  %v830 = vmax.f32 %v824, 0.0
  %v831 = vld [vmem:[%s3] sm:$0xff]
  %v832 = vld [vmem:[%s3 + $0x8] sm:$0xff]
  %v833 = vld [vmem:[%s3 + $0x10] sm:$0xff]
  %v834 = vld [vmem:[%s3 + $0x18] sm:$0xff]
  %v835 = vld [vmem:[%s3 + $0x20] sm:$0xff]
  %v836 = vld [vmem:[%s3 + $0x28] sm:$0xff]
  %v837 = vmul.f32 %v825, %v831
  %v838 = vmul.f32 %v826, %v832
  %v839 = vmul.f32 %v827, %v833
  %v840 = vmul.f32 %v828, %v834
  %v841 = vmul.f32 %v829, %v835
  %v842 = vmul.f32 %v830, %v836
  %vm843 = vcmask 195584
  %v844 = vsel %vm843, %v837, -inf
  %v845 = vsel %vm843, %v838, -inf
  %v846 = vsel %vm843, %v839, -inf
  %v847 = vmax.f32 %v844, %v845
  %v848 = vmax.f32 %v847, %v846
  %v849 = vrot.slane %v848, 4
  %v850 = vmax.f32 %v848, %v849
  %v851 = vrot.slane %v850, 2
  %v852 = vmax.f32 %v850, %v851
  %v853 = vrot.slane %v852, 1
  %v854 = vmax.f32 %v852, %v853
  %v855 = vsel %vm843, %v840, -inf
  %v856 = vsel %vm843, %v841, -inf
  %v857 = vsel %vm843, %v842, -inf
  %v858 = vmax.f32 %v855, %v856
  %v859 = vmax.f32 %v858, %v857
  %v860 = vrot.slane %v859, 4
  %v861 = vmax.f32 %v859, %v860
  %v862 = vrot.slane %v861, 2
  %v863 = vmax.f32 %v861, %v862
  %v864 = vrot.slane %v863, 1
  %v865 = vmax.f32 %v863, %v864
  %vm866 = vcmask 1040384
  %v867 = vsel %vm866, %v854, %v865
  %vm868 = vcmask 1041408
  %v869 = vsel %vm868, %v867, 0.0
  %v870 = vld [vmem:[%s4] sm:$0xff]
  %v871 = vld [vmem:[%s4 + $0x8] sm:$0xff]
  %v872 = vld [vmem:[%s4 + $0x10] sm:$0xff]
  %v873 = vld [vmem:[%s5] sm:$0x1]
  %v875 = vlaneseq
  %v876 = vshrl.u32 %v875, 7
  %v877 = vsub.s32 0, %v876
  %v878 = vrot.slane %v873, %v877
  %v881 = vsel %vm843, %v869, 0
  %883 = vmatprep.subr.mxu0 0.0
  %884 = vmatpush1.msra.mxu0 %v870
  %885 = vmatprep.subr.mxu0 0.0
  %886 = vmatpush1.msra.mxu0 %v871
  %887 = vmatprep.subr.mxu0 0.0
  %888 = vmatpush1.msra.mxu0 %v872
  %889 = vmatprep.subr.mxu0 0.0
  %890 = vmatpush1.msra.mxu0 0.0
  %891 = vmatprep.subr.mxu0 0.0
  %892 = vmatpush1.msra.mxu0 0.0
  %893 = vmatprep.subr.mxu0 0.0
  %894 = vmatpush1.msra.mxu0 0.0
  %895 = vmatprep.subr.mxu0 0.0
  %896 = vmatpush1.msra.mxu0 0.0
  %897 = vmatprep.subr.mxu0 0.0
  %898 = vmatpush1.msra.mxu0 0.0
  %899 = vmatprep.subr.mxu0 0.0
  %900 = vmatpush1.msra.mxu0 0.0
  %901 = vmatprep.subr.mxu0 0.0
  %902 = vmatpush1.msra.mxu0 0.0
  %903 = vmatprep.subr.mxu0 0.0
  %904 = vmatpush1.msra.mxu0 0.0
  %905 = vmatprep.subr.mxu0 0.0
  %906 = vmatpush1.msra.mxu0 0.0
  %907 = vmatprep.subr.mxu0 0.0
  %908 = vmatpush1.msra.mxu0 0.0
  %909 = vmatprep.subr.mxu0 0.0
  %910 = vmatpush1.msra.mxu0 0.0
  %911 = vmatprep.subr.mxu0 0.0
  %912 = vmatpush1.msra.mxu0 0.0
  %913 = vmatprep.subr.mxu0 0.0
  %914 = vmatpush1.msra.mxu0 0.0
  %915 = vmatprep.subr.mxu0 0.0
  %916 = vmatpush1.msra.mxu0 0.0
  %917 = vmatprep.subr.mxu0 0.0
  %918 = vmatpush1.msra.mxu0 0.0
  %919 = vmatprep.subr.mxu0 0.0
  %920 = vmatpush1.msra.mxu0 0.0
  %921 = vmatprep.subr.mxu0 0.0
  %922 = vmatpush1.msra.mxu0 0.0
  %923 = vmatprep.subr.mxu0 0.0
  %924 = vmatpush1.msra.mxu0 0.0
  %925 = vmatprep.subr.mxu0 0.0
  %926 = vmatpush1.msra.mxu0 0.0
  %927 = vmatprep.subr.mxu0 0.0
  %928 = vmatpush1.msra.mxu0 0.0
  %929 = vmatprep.subr.mxu0 0.0
  %930 = vmatpush1.msra.mxu0 0.0
  %931 = vmatprep.subr.mxu0 0.0
  %932 = vmatpush1.msra.mxu0 0.0
  %933 = vmatprep.subr.mxu0 0.0
  %934 = vmatpush1.msra.mxu0 0.0
  %935 = vmatprep.subr.mxu0 0.0
  %936 = vmatpush1.msra.mxu0 0.0
  %937 = vmatprep.subr.mxu0 0.0
  %938 = vmatpush1.msra.mxu0 0.0
  %939 = vmatprep.subr.mxu0 0.0
  %940 = vmatpush1.msra.mxu0 0.0
  %941 = vmatprep.subr.mxu0 0.0
  %942 = vmatpush1.msra.mxu0 0.0
  %943 = vmatprep.subr.mxu0 0.0
  %944 = vmatpush1.msra.mxu0 0.0
  %945 = vmatprep.subr.mxu0 0.0
  %946 = vmatpush1.msra.mxu0 0.0
  %947 = vmatprep.mubr.f32.mxu0 0.0
  %948 = vmatmul.mubr.f32.gmra.mrb[0].mxu0 %v881
  %v949 = vpop.f32.mrb[0].mxu0
  %v950 = vadd.f32 %v878, %v949
  %v951 = vpop.f32.mrb[0].mxu0
  %952 = vdwg.mxu0
  %953 = vst [vmem:[%s6] sm:$0xff] %v950
  // Predicated region
  $region26: #{cnn_forward.1} parent=0 // pred_check
    _
  $region27: #{cnn_forward.1} parent=0 // pred_check_branch
    %955 = sbr.rel (0) target = $region29
  $region28: #{cnn_forward.1} parent=0 // pred_region
    _
  $region29: #{cnn_forward.1} parent=0 // pred_fallthru
    _
  // Predicated region
  $region30: #{cnn_forward.1} parent=0 // pred_check
    _
  $region31: #{cnn_forward.1} parent=0 // pred_check_branch
    %957 = sbr.rel (0) target = $region33
  $region32: #{cnn_forward.1} parent=0 // pred_region
    _
  $region33: #{cnn_forward.1} parent=0 // pred_fallthru
    _

</llo_original>
